<compile_context>
chip_gen: v5e
topology: v5e:2x2
jax: 0.10.0
libtpu: 0.0.40
codegen_flags: <defaults>
</compile_context>

<pallas_src>
import jax
import jax.numpy as jnp
from jax.experimental import pallas as pl
from jax.experimental.pallas import tpu as pltpu


def _round_up(a, m):
    return (a + m - 1) // m * m


def _linear_kernel(x_ref, w_ref, b_ref, o_ref):
    # x_ref: (tm, tk), w_ref: (tk, tn) [pre-transposed], b_ref: (1, tn),
    # o_ref: (tm, tn) f32 — resident across the K axis (index_map k-invariant).
    k = pl.program_id(2)

    @pl.when(k == 0)
    def _():
        o_ref[...] = jnp.zeros_like(o_ref)

    # MXU matmul on lane-dense tiles; accumulate straight into the output block.
    o_ref[...] += jnp.dot(
        x_ref[...], w_ref[...], preferred_element_type=jnp.float32
    )

    @pl.when(k == pl.num_programs(2) - 1)
    def _():
        # Bias fused into the last K step: still a single output store pass.
        o_ref[...] += b_ref[...]


def prepare_linear_params(weight, bias, *, tn=256, tk=512):
    """One-time parameter prep (hoisted out of forward): transpose + pad.

    weight: (out_f, in_f) torch.nn.Linear layout; bias: (out_f,).
    Returns a dict with both the unpadded (fast-path) and padded (kernel)
    parameter tensors plus the tile sizes used for padding.
    """
    out_f, in_f = weight.shape
    tk = min(tk, _round_up(max(in_f, 1), 128))
    tn = min(tn, _round_up(max(out_f, 1), 128))
    INp = _round_up(in_f, tk)
    OUTp = _round_up(out_f, tn)

    w_t = weight.astype(jnp.float32).T                    # (in_f, out_f)
    b = bias.astype(jnp.float32)
    wp = jnp.pad(w_t, ((0, INp - in_f), (0, OUTp - out_f)))
    bp = jnp.pad(b.reshape(1, -1), ((0, 0), (0, OUTp - out_f)))
    return {
        "w_t": w_t, "b": b, "wp": wp, "bp": bp,
        "in_f": in_f, "out_f": out_f,
        "tn": tn, "tk": tk, "INp": INp, "OUTp": OUTp,
    }


def neural_network_forward(x, params, *, tm=128, force_pallas=False):
    """Equivalent of NeuralNetwork.forward: Flatten -> Linear."""
    B = x.shape[0]
    x2d = x.reshape(B, -1).astype(jnp.float32)            # nn.Flatten
    in_f, out_f = params["in_f"], params["out_f"]
    assert x2d.shape[1] == in_f

    # Fast path: for the literal Linear(1,1), B=2 module (and anything with
    # K < 1 tile or a tiny output) the pallas_call is pure overhead.
    if not force_pallas and (in_f < 128 or B * out_f < 8 * 128):
        return x2d @ params["w_t"] + params["b"]

    tn, tk = params["tn"], params["tk"]
    INp, OUTp = params["INp"], params["OUTp"]
    wp, bp = params["wp"], params["bp"]

    tm = min(tm, _round_up(B, 8))
    Bp = _round_up(B, tm)
    xp = jnp.pad(x2d, ((0, Bp - B), (0, INp - in_f)))     # single fused pad

    grid = (Bp // tm, OUTp // tn, INp // tk)              # reduction axis last

    out_padded = pl.pallas_call(
        _linear_kernel,
        out_shape=jax.ShapeDtypeStruct((Bp, OUTp), jnp.float32),
        grid_spec=pltpu.PrefetchScalarGridSpec(
            num_scalar_prefetch=0,
            grid=grid,
            in_specs=[
                pl.BlockSpec((tm, tk), lambda i, j, k: (i, k)),   # x tile
                pl.BlockSpec((tk, tn), lambda i, j, k: (k, j)),   # w.T tile
                pl.BlockSpec((1, tn), lambda i, j, k: (0, j)),    # bias row
            ],
            out_specs=pl.BlockSpec((tm, tn), lambda i, j, k: (i, j)),
        ),
        compiler_params=pltpu.CompilerParams(
            dimension_semantics=("parallel", "parallel", "arbitrary"),
            vmem_limit_bytes=48 << 20,   # v7x-safe (64 MiB phys), fine on v5e/v6e
        ),
    )(xp, wp, bp)

    return out_padded[:B, :out_f]


if __name__ == "__main__":
    key = jax.random.PRNGKey(0)
    kx, kw, kb, kx2, kw2, kb2 = jax.random.split(key, 6)

    # --- Case 1: the literal module — Linear(1, 1), batch=2 (fast path). ---
    B, IN, OUT = 2, 1, 1
    x = jax.random.normal(kx, (B, IN), dtype=jnp.float32) * 10.0 + 50.0
    bound = 1.0 / (IN ** 0.5)
    weight = jax.random.uniform(kw, (OUT, IN), jnp.float32, -bound, bound)
    bias = jax.random.uniform(kb, (OUT,), jnp.float32, -bound, bound)

    params = prepare_linear_params(weight, bias)
    out = jax.block_until_ready(neural_network_forward(x, params))
    ref = x.reshape(B, -1) @ weight.T + bias
    assert out.shape == (B, OUT)
    assert jnp.allclose(out, ref, atol=1e-5), (out, ref)

    # --- Case 2: exercise the general Pallas template (runs the kernel). ---
    B2, IN2, OUT2 = 16, 1024, 192   # 2 K-steps, padded N -> tests init/finalize
    x2 = jax.random.normal(kx2, (B2, IN2), dtype=jnp.float32)
    bound2 = 1.0 / (IN2 ** 0.5)
    weight2 = jax.random.uniform(kw2, (OUT2, IN2), jnp.float32, -bound2, bound2)
    bias2 = jax.random.uniform(kb2, (OUT2,), jnp.float32, -bound2, bound2)

    params2 = prepare_linear_params(weight2, bias2)
    out2 = jax.block_until_ready(
        neural_network_forward(x2, params2, force_pallas=True)
    )
    ref2 = x2 @ weight2.T + bias2
    assert out2.shape == (B2, OUT2)
    assert jnp.allclose(out2, ref2, rtol=1e-5, atol=1e-4), (
        float(jnp.max(jnp.abs(out2 - ref2)))
    )

    print("KERNEL_OK")
</pallas_src>

<mosaic_0001>
module attributes {stable_mosaic.version = 11 : i64} {
  func.func @_linear_kernel(%arg0: i32, %arg1: i32, %arg2: i32, %arg3: memref<16x512xf32, #tpu.memory_space<vmem>>, %arg4: memref<512x256xf32, #tpu.memory_space<vmem>>, %arg5: memref<1x256xf32, #tpu.memory_space<vmem>>, %arg6: memref<16x256xf32, #tpu.memory_space<vmem>>) attributes {dimension_semantics = [#tpu.dimension_semantics<parallel>, #tpu.dimension_semantics<parallel>, #tpu.dimension_semantics<arbitrary>], iteration_bounds = array<i64: 1, 1, 2>, scalar_prefetch = 0 : i64, scratch_operands = 0 : i64, tpu.core_type = #tpu.core_type<tc>, window_params = [{transform_indices = @transform_0, window_bounds = array<i64: 16, 512>}, {transform_indices = @transform_1, window_bounds = array<i64: 512, 256>}, {transform_indices = @transform_2, window_bounds = array<i64: 1, 256>}, {transform_indices = @transform_3, window_bounds = array<i64: 16, 256>}]} {
    %c0_i32 = arith.constant 0 : i32
    %0 = arith.cmpi eq, %arg2, %c0_i32 : i32
    %1 = arith.extui %0 : i1 to i32
    %c0_i32_0 = arith.constant 0 : i32
    %2 = arith.cmpi ne, %1, %c0_i32_0 : i32
    scf.if %2 {
      %cst_9 = arith.constant 0.000000e+00 : f32
      %12 = vector.broadcast %cst_9 : f32 to vector<16x256xf32>
      %c0_10 = arith.constant 0 : index
      %c0_11 = arith.constant 0 : index
      %13 = vector.load %arg6[%c0_10, %c0_11] : memref<16x256xf32, #tpu.memory_space<vmem>>, vector<16x256xf32>
      tpu.vector_store %arg6[%c0_10, %c0_11], %12 {strides = array<i32>} : memref<16x256xf32, #tpu.memory_space<vmem>>, vector<16x256xf32>,
    } else {
    }
    %c0 = arith.constant 0 : index
    %c0_1 = arith.constant 0 : index
    %3 = vector.load %arg6[%c0, %c0_1] : memref<16x256xf32, #tpu.memory_space<vmem>>, vector<16x256xf32>
    %c0_2 = arith.constant 0 : index
    %c0_3 = arith.constant 0 : index
    %4 = vector.load %arg3[%c0_2, %c0_3] : memref<16x512xf32, #tpu.memory_space<vmem>>, vector<16x512xf32>
    %c0_4 = arith.constant 0 : index
    %c0_5 = arith.constant 0 : index
    %5 = vector.load %arg4[%c0_4, %c0_5] : memref<512x256xf32, #tpu.memory_space<vmem>>, vector<512x256xf32>
    %cst = arith.constant dense<0.000000e+00> : vector<16x256xf32>
    %6 = tpu.matmul %4, %5, %cst {dimension_numbers = #tpu.dot_dimension_numbers<[1], [0], [0], [1], [0, 0, 1, 1], [], []>} : vector<16x512xf32>, vector<512x256xf32>, vector<16x256xf32> -> vector<16x256xf32>
    %7 = arith.addf %3, %6 : vector<16x256xf32>
    %c0_6 = arith.constant 0 : index
    %c0_7 = arith.constant 0 : index
    %8 = vector.load %arg6[%c0_6, %c0_7] : memref<16x256xf32, #tpu.memory_space<vmem>>, vector<16x256xf32>
    tpu.vector_store %arg6[%c0_6, %c0_7], %7 {strides = array<i32>} : memref<16x256xf32, #tpu.memory_space<vmem>>, vector<16x256xf32>,
    %c1_i32 = arith.constant 1 : i32
    %9 = arith.cmpi eq, %arg2, %c1_i32 : i32
    %10 = arith.extui %9 : i1 to i32
    %c0_i32_8 = arith.constant 0 : i32
    %11 = arith.cmpi ne, %10, %c0_i32_8 : i32
    scf.if %11 {
      %c0_9 = arith.constant 0 : index
      %c0_10 = arith.constant 0 : index
      %12 = vector.load %arg6[%c0_9, %c0_10] : memref<16x256xf32, #tpu.memory_space<vmem>>, vector<16x256xf32>
      %c0_11 = arith.constant 0 : index
      %c0_12 = arith.constant 0 : index
      %13 = vector.load %arg5[%c0_11, %c0_12] : memref<1x256xf32, #tpu.memory_space<vmem>>, vector<1x256xf32>
      %14 = vector.broadcast %13 : vector<1x256xf32> to vector<16x256xf32>
      %15 = arith.addf %12, %14 : vector<16x256xf32>
      %c0_13 = arith.constant 0 : index
      %c0_14 = arith.constant 0 : index
      %16 = vector.load %arg6[%c0_13, %c0_14] : memref<16x256xf32, #tpu.memory_space<vmem>>, vector<16x256xf32>
      tpu.vector_store %arg6[%c0_13, %c0_14], %15 {strides = array<i32>} : memref<16x256xf32, #tpu.memory_space<vmem>>, vector<16x256xf32>,
    } else {
    }
    return
  }
  func.func @transform_0(%arg0: i32, %arg1: i32, %arg2: i32) -> (i32, i32) {
    %c0_i32 = arith.constant 0 : i32
    return %arg0, %arg2 : i32, i32
  }
  func.func @transform_1(%arg0: i32, %arg1: i32, %arg2: i32) -> (i32, i32) {
    %c0_i32 = arith.constant 0 : i32
    return %arg2, %arg1 : i32, i32
  }
  func.func @transform_2(%arg0: i32, %arg1: i32, %arg2: i32) -> (i32, i32) {
    %c0_i32 = arith.constant 0 : i32
    %c0_i32_0 = arith.constant 0 : i32
    return %c0_i32, %arg1 : i32, i32
  }
  func.func @transform_3(%arg0: i32, %arg1: i32, %arg2: i32) -> (i32, i32) {
    %c0_i32 = arith.constant 0 : i32
    return %arg0, %arg1 : i32, i32
  }
}

</mosaic_0001>

<llo_original>
// kernel: tpu_custom_call.1
$region0: #{tpu_custom_call.1}
  #allocation0 [shape = 'u32[]', space=smem, size = 0x4, offset = 0x4, fixed_abs, tag = 'smem constant byte address 0x4 - core index']
  #allocation1 [shape = 'u32[72,128]{1,0:T(1,128)}', space=vmem, size = 0x9000, scoped, tag = 'internal scratch']
  %s0 = inlined_call_operand.hbm [shape: f32[16,1024], index: 0, kind: input, shape index: {}]
  %s1 = inlined_call_operand.hbm [shape: f32[1024,256], index: 1, kind: input, shape index: {}]
  %s2 = inlined_call_operand.hbm [shape: f32[1,256], index: 2, kind: input, shape index: {}]
  %s3 = inlined_call_operand.hbm [shape: f32[16,256], index: 3, kind: output, shape index: {}]
  %s4 = sld [smem:[#allocation0]]
  $region65: #{tpu_custom_call.1} parent=0
    _
  %s6 = ssub.s32 1, %s4
  %s7 = scalar_select 0, %s6, %s4
  $region1: #{tpu_custom_call.1} parent=0
    #allocation2 [shape = 'u8[65536]{0}', space=vmem, size = 0x10000, scoped, tag = 'input window, operand 0']
    #allocation3 [shape = 's32[2]{0}', space=sflag, size = 0x8, scoped, tag = 'scoped memory for tpu_custom_call.1']
    #allocation4 [shape = 's32[2]{0}', space=sflag, size = 0x8, scoped, tag = 'scoped memory for tpu_custom_call.1']
    #allocation5 [shape = 'u8[1048576]{0}', space=vmem, size = 0x100000, scoped, tag = 'input window, operand 1']
    #allocation6 [shape = 's32[2]{0}', space=sflag, size = 0x8, scoped, tag = 'scoped memory for tpu_custom_call.1']
    #allocation7 [shape = 'u8[1024]{0}', space=vmem, size = 0x400, scoped, tag = 'input window, operand 2, single buffered']
    #allocation8 [shape = 'u8[16384]{0}', space=vmem, size = 0x4000, scoped, tag = 'output window, operand 0, single buffered']
    %8 = vsyncpa [#allocation3], 0
    %s9 = scalar_lea.sflag [#allocation3], 1
    %10 = vsyncpa %s9, 0
    %11 = vsyncpa [#allocation6], 0
    %s12 = scalar_lea.sflag [#allocation6], 1
    %13 = vsyncpa %s12, 0
    %14 = vsyncpa [#allocation4], 0
    loop: start=0, step=1, limit=4
    $region2: #{tpu_custom_call.1} parent=1 // loop_pre_header
      _
    $region3: #{tpu_custom_call.1} parent=1 // loop_header
      %s16 = sphi 0, %s20
      %p17 = scmp.ge.s32.totalorder %s16, 4
      %s23 = sphi 0, %s42
      %s24 = sphi 0, %s38
      %s25 = sphi 0, %s34
      %s26 = sphi 0, %s23
      %s27 = sphi 0, %s24
      %s28 = sphi 0, %s25
      %s29 = sphi 0, %s26
      %s30 = sphi 0, %s27
      %s31 = sphi 0, %s28
      %s47 = sphi 0, %s49
      %s50 = sphi 0, %s47
      %s51 = sphi 0, %s50
      %s67 = sphi 0, %s51
      %s75 = sphi 0, %s77
      %s78 = sphi 0, %s75
      %s79 = sphi 0, %s78
      %s95 = sphi 0, %s79
      %s101 = sphi 0, %s103
      %s104 = sphi 0, %s101
      %s105 = sphi 0, %s104
      %s121 = sphi 0, %s105
      %s129 = sphi 0, %s131
      %s132 = sphi 0, %s129
      %s133 = sphi 0, %s132
      %s149 = sphi 0, %s133
    $region4: #{tpu_custom_call.1} parent=1 // loop_header_branch
      %19 = sbr.rel (%p17) target = $region8
    $region5: #{tpu_custom_call.1} parent=1 // loop_body
      %s21 = ssub.s32 %s16, 1
      %s22 = ssub.s32 %s16, 2
      %s32 = sadd.s32 1, %s25
      %p33 = scmp.ge.s32.totalorder %s32, 2
      %s34 = scalar_select %p33, 0, %s32
      %s35 = sadd.s32 1, %s24
      %s36 = scalar_select %p33, %s35, %s24
      %p37 = scmp.ge.s32.totalorder %s36, 1
      %s38 = scalar_select %p37, 0, %s36
      %s39 = sadd.s32 1, %s23
      %s40 = scalar_select %p37, %s39, %s23
      %p41 = scmp.ge.s32.totalorder %s40, 1
      %s42 = scalar_select %p41, 0, %s40
      %s43 = ssub.s32 %s23, %s42
      %s44 = ssub.s32 %s25, %s34
      %s45 = sor.u32 %s43, %s44
      %p46 = scmp.eq.s32.totalorder %s45, 0
      %s48 = sadd.s32 %s47, 1
      %s49 = scalar_select %p46, %s47, %s48
      %p52 = pneg %p46
      %p53 = scmp.eq.s32.totalorder %s16, 1
      %p54 = por %p52, %p53
      %p55 = scmp.ne.s32.totalorder %s47, %s50
      %p56 = scmp.eq.s32.totalorder %s16, 0
      %p57 = por %p55, %p56
      %p58 = scmp.ne.s32.totalorder %s47, %s50
      %p59 = scmp.eq.s32.totalorder %s21, 1
      %p60 = por %p58, %p59
      %p61 = scmp.ne.s32.totalorder %s50, %s51
      %p62 = scmp.eq.s32.totalorder %s21, 0
      %p63 = por %p61, %p62
      %p64 = scmp.ne.s32.totalorder %s50, %s51
      %p65 = scmp.eq.s32.totalorder %s22, 1
      %p66 = por %p64, %p65
      %p68 = scmp.ne.s32.totalorder %s51, %s67
      %p69 = scmp.eq.s32.totalorder %s22, 0
      %p70 = por %p68, %p69
      %s71 = ssub.s32 %s25, %s34
      %s72 = ssub.s32 %s24, %s38
      %s73 = sor.u32 %s71, %s72
      %p74 = scmp.eq.s32.totalorder %s73, 0
      %s76 = sadd.s32 %s75, 1
      %s77 = scalar_select %p74, %s75, %s76
      %p80 = pneg %p74
      %p81 = scmp.eq.s32.totalorder %s16, 1
      %p82 = por %p80, %p81
      %p83 = scmp.ne.s32.totalorder %s75, %s78
      %p84 = scmp.eq.s32.totalorder %s16, 0
      %p85 = por %p83, %p84
      %p86 = scmp.ne.s32.totalorder %s75, %s78
      %p87 = scmp.eq.s32.totalorder %s21, 1
      %p88 = por %p86, %p87
      %p89 = scmp.ne.s32.totalorder %s78, %s79
      %p90 = scmp.eq.s32.totalorder %s21, 0
      %p91 = por %p89, %p90
      %p92 = scmp.ne.s32.totalorder %s78, %s79
      %p93 = scmp.eq.s32.totalorder %s22, 1
      %p94 = por %p92, %p93
      %p96 = scmp.ne.s32.totalorder %s79, %s95
      %p97 = scmp.eq.s32.totalorder %s22, 0
      %p98 = por %p96, %p97
      %s99 = ssub.s32 %s24, %s38
      %p100 = scmp.eq.s32.totalorder %s99, 0
      %s102 = sadd.s32 %s101, 1
      %s103 = scalar_select %p100, %s101, %s102
      %p106 = pneg %p100
      %p107 = scmp.eq.s32.totalorder %s16, 1
      %p108 = por %p106, %p107
      %p109 = scmp.ne.s32.totalorder %s101, %s104
      %p110 = scmp.eq.s32.totalorder %s16, 0
      %p111 = por %p109, %p110
      %p112 = scmp.ne.s32.totalorder %s101, %s104
      %p113 = scmp.eq.s32.totalorder %s21, 1
      %p114 = por %p112, %p113
      %p115 = scmp.ne.s32.totalorder %s104, %s105
      %p116 = scmp.eq.s32.totalorder %s21, 0
      %p117 = por %p115, %p116
      %p118 = scmp.ne.s32.totalorder %s104, %s105
      %p119 = scmp.eq.s32.totalorder %s22, 1
      %p120 = por %p118, %p119
      %p122 = scmp.ne.s32.totalorder %s105, %s121
      %p123 = scmp.eq.s32.totalorder %s22, 0
      %p124 = por %p122, %p123
      %s125 = ssub.s32 %s23, %s42
      %s126 = ssub.s32 %s24, %s38
      %s127 = sor.u32 %s125, %s126
      %p128 = scmp.eq.s32.totalorder %s127, 0
      %s130 = sadd.s32 %s129, 1
      %s131 = scalar_select %p128, %s129, %s130
      %p134 = pneg %p128
      %p135 = scmp.eq.s32.totalorder %s16, 1
      %p136 = por %p134, %p135
      %p137 = scmp.ne.s32.totalorder %s129, %s132
      %p138 = scmp.eq.s32.totalorder %s16, 0
      %p139 = por %p137, %p138
      %p140 = scmp.ne.s32.totalorder %s129, %s132
      %p141 = scmp.eq.s32.totalorder %s21, 1
      %p142 = por %p140, %p141
      %p143 = scmp.ne.s32.totalorder %s132, %s133
      %p144 = scmp.eq.s32.totalorder %s21, 0
      %p145 = por %p143, %p144
      %p146 = scmp.ne.s32.totalorder %s132, %s133
      %p147 = scmp.eq.s32.totalorder %s22, 1
      %p148 = por %p146, %p147
      %p150 = scmp.ne.s32.totalorder %s133, %s149
      %p151 = scmp.eq.s32.totalorder %s22, 0
      %p152 = por %p150, %p151
      %p153 = scmp.le.s32.totalorder 1, %s16
      %p154 = scmp.lt.s32.totalorder %s16, 3
      %p155 = pnand %p153, %p154
      %p156 = pneg %p155
      // Predicated region
      $region9: #{tpu_custom_call.1} parent=5 // pred_check
        _
      $region10: #{tpu_custom_call.1} parent=5 // pred_check_branch
        %158 = sbr.rel (%p155) target = $region12
      $region11: #{tpu_custom_call.1} parent=5 // pred_region
        %s159 = ssub.s32 %s16, 1
        // Predicated region
        $region13: #{tpu_custom_call.1} parent=11 // pred_check
          %p160 = pneg %p117
        $region14: #{tpu_custom_call.1} parent=11 // pred_check_branch
          %162 = sbr.rel (%p160) target = $region16
        $region15: #{tpu_custom_call.1} parent=11 // pred_region
          %s163 = smul.u32 2, %s27
          %165 = vsyncadd [#allocation6], 0
          %s166 = scalar_lea.hbm %s2, %s163
          %s168 = sshll.u32 %s166, 4
          %s169 = int_to_ptr.hbm [resolvable:$true] %s168
          %s170 = sshll.u32 [#allocation7], 4
          %s171 = int_to_ptr.vmem [resolvable:$true] %s170
          %173 = dma.hbm_to_vmem [thread:$0]  %s169, 32, %s171, [#allocation6]
        $region16: #{tpu_custom_call.1} parent=11 // pred_fallthru
          _
      $region12: #{tpu_custom_call.1} parent=5 // pred_fallthru
        _
      %p174 = scmp.lt.s32.totalorder %s16, 2
      // Predicated region
      $region17: #{tpu_custom_call.1} parent=5 // pred_check
        %p175 = pneg %p174
      $region18: #{tpu_custom_call.1} parent=5 // pred_check_branch
        %177 = sbr.rel (%p175) target = $region20
      $region19: #{tpu_custom_call.1} parent=5 // pred_region
        // Predicated region
        $region21: #{tpu_custom_call.1} parent=19 // pred_check
          %p178 = pneg %p57
        $region22: #{tpu_custom_call.1} parent=19 // pred_check_branch
          %180 = sbr.rel (%p178) target = $region24
        $region23: #{tpu_custom_call.1} parent=19 // pred_region
          %s181 = sand.u32 %s47, 1
          %s182 = scalar_lea.sflag [#allocation3], %s181
          %s183 = sand.u32 %s47, 1
          %s184 = smul.addr %s183, 64
          %s185 = scalar_lea.vmem [#allocation2], %s184
          %s186 = smul.u32 2, %s23
          %s187 = smul.u32 4, %s25
          %189 = vsyncadd %s182, 0
          %s190 = smul.addr %s186, 8
          %s191 = sadd.s32 %s187, %s190
          %s192 = smul.addr %s191, 8
          %s193 = scalar_lea.hbm %s0, %s192
          %s194 = sshll.u32 %s193, 4
          %s195 = int_to_ptr.hbm [resolvable:$true] %s194
          %s196 = sshll.u32 %s185, 4
          %s197 = int_to_ptr.vmem [resolvable:$true] %s196
          %202 = dma.hbm_to_vmem [thread:$0]  %s195, 1024, %s197, %s182, 1024, 512, 32
        $region24: #{tpu_custom_call.1} parent=19 // pred_fallthru
          _
        // Predicated region
        $region25: #{tpu_custom_call.1} parent=19 // pred_check
          %p203 = pneg %p85
        $region26: #{tpu_custom_call.1} parent=19 // pred_check_branch
          %205 = sbr.rel (%p203) target = $region28
        $region27: #{tpu_custom_call.1} parent=19 // pred_region
          %s206 = sand.u32 %s16, 1
          %s207 = scalar_lea.sflag [#allocation6], %s206
          %s208 = sand.u32 %s75, 1
          %s209 = smul.addr %s208, 1024
          %s210 = scalar_lea.vmem [#allocation5], %s209
          %s211 = smul.u32 64, %s25
          %s212 = smul.u32 2, %s24
          %214 = vsyncadd %s207, 0
          %s215 = smul.addr %s211, 2
          %s216 = sadd.s32 %s212, %s215
          %s217 = smul.addr %s216, 8
          %s218 = scalar_lea.hbm %s1, %s217
          %s219 = sshll.u32 %s218, 4
          %s220 = int_to_ptr.hbm [resolvable:$true] %s219
          %s221 = sshll.u32 %s210, 4
          %s222 = int_to_ptr.vmem [resolvable:$true] %s221
          %227 = dma.hbm_to_vmem [thread:$0]  %s220, 16384, %s222, %s207, 256, 256, 16
        $region28: #{tpu_custom_call.1} parent=19 // pred_fallthru
          _
      $region20: #{tpu_custom_call.1} parent=5 // pred_fallthru
        _
      %p228 = scmp.le.s32.totalorder 1, %s16
      %p229 = scmp.lt.s32.totalorder %s16, 3
      %p230 = pnand %p228, %p229
      %p231 = pneg %p230
      // Predicated region
      $region29: #{tpu_custom_call.1} parent=5 // pred_check
        _
      $region30: #{tpu_custom_call.1} parent=5 // pred_check_branch
        %233 = sbr.rel (%p230) target = $region32
      $region31: #{tpu_custom_call.1} parent=5 // pred_region
        %s234 = ssub.s32 %s16, 1
        %s235 = sand.u32 %s50, 1
        %s236 = scalar_lea.sflag [#allocation3], %s235
        %s237 = sand.u32 %s50, 1
        %s238 = smul.addr %s237, 64
        %s239 = scalar_lea.vmem [#allocation2], %s238
        // Predicated region
        $region33: #{tpu_custom_call.1} parent=31 // pred_check
          %p240 = pneg %p63
        $region34: #{tpu_custom_call.1} parent=31 // pred_check_branch
          %242 = sbr.rel (%p240) target = $region36
        $region35: #{tpu_custom_call.1} parent=31 // pred_region
          %244 = dma.done %s236, 1024
        $region36: #{tpu_custom_call.1} parent=31 // pred_fallthru
          _
        %s245 = sand.u32 %s21, 1
        %s246 = scalar_lea.sflag [#allocation6], %s245
        %s247 = sand.u32 %s78, 1
        %s248 = smul.addr %s247, 1024
        %s249 = scalar_lea.vmem [#allocation5], %s248
        // Predicated region
        $region37: #{tpu_custom_call.1} parent=31 // pred_check
          %p250 = pneg %p91
        $region38: #{tpu_custom_call.1} parent=31 // pred_check_branch
          %252 = sbr.rel (%p250) target = $region40
        $region39: #{tpu_custom_call.1} parent=31 // pred_region
          %254 = dma.done %s246, 16384
        $region40: #{tpu_custom_call.1} parent=31 // pred_fallthru
          _
        // Predicated region
        $region41: #{tpu_custom_call.1} parent=31 // pred_check
          %p255 = pneg %p117
        $region42: #{tpu_custom_call.1} parent=31 // pred_check_branch
          %257 = sbr.rel (%p255) target = $region44
        $region43: #{tpu_custom_call.1} parent=31 // pred_region
          %259 = dma.done [#allocation6], 32
        $region44: #{tpu_custom_call.1} parent=31 // pred_fallthru
          _
        %s260 = sand.u32 %s50, 1
        %s261 = scalar_lea.sflag [#allocation3], %s260
        %s262 = sand.u32 %s50, 1
        %s263 = smul.addr %s262, 64
        %s264 = scalar_lea.vmem [#allocation2], %s263
        %p265 = pneg %p63
        %p266 = pneg %p60
        %s267 = sand.u32 %s21, 1
        %s268 = scalar_lea.sflag [#allocation6], %s267
        %s269 = sand.u32 %s78, 1
        %s270 = smul.addr %s269, 1024
        %s271 = scalar_lea.vmem [#allocation5], %s270
        %p272 = pneg %p91
        %p273 = pneg %p88
        %p274 = pneg %p117
        %p275 = pneg %p114
        %p276 = pneg %p145
        %p277 = pneg %p142
        %s278 = smul.u32 2, %s26
        %s279 = smul.u32 4, %s28
        %s280 = smul.u32 64, %s28
        %s281 = smul.u32 2, %s27
        %s282 = smul.u32 2, %s27
        %s283 = smul.u32 2, %s26
        %s284 = smul.u32 2, %s27
        %p285 = scmp.eq.s32.totalorder %s28, 0
        // Predicated region
        $region45: #{tpu_custom_call.1} parent=31 // pred_check
          %p286 = pneg %p285
        $region46: #{tpu_custom_call.1} parent=31 // pred_check_branch
          %288 = sbr.rel (%p286) target = $region48
        $region47: #{tpu_custom_call.1} parent=31 // pred_region
          %289 = vst [vmem:[#allocation8] sm:$0xff] 0.0
          %290 = vst [vmem:[#allocation8 + $0x8] sm:$0xff] 0.0
          %291 = vst [vmem:[#allocation8 + $0x10] sm:$0xff] 0.0
          %292 = vst [vmem:[#allocation8 + $0x18] sm:$0xff] 0.0
        $region48: #{tpu_custom_call.1} parent=31 // pred_fallthru
          _
        %v293 = vld [vmem:[#allocation8] sm:$0xff]
        %v294 = vld [vmem:[#allocation8 + $0x8] sm:$0xff]
        %v295 = vld [vmem:[#allocation8 + $0x10] sm:$0xff]
        %v296 = vld [vmem:[#allocation8 + $0x18] sm:$0xff]
        %v297 = vld [vmem:[%s239] sm:$0xff]
        %v298 = vld [vmem:[%s239 + $0x8] sm:$0xff]
        %v299 = vld [vmem:[%s239 + $0x10] sm:$0xff]
        %v300 = vld [vmem:[%s239 + $0x18] sm:$0xff]
        %v301 = vld [vmem:[%s239 + $0x20] sm:$0xff]
        %v302 = vld [vmem:[%s239 + $0x28] sm:$0xff]
        %v303 = vld [vmem:[%s239 + $0x30] sm:$0xff]
        %v304 = vld [vmem:[%s239 + $0x38] sm:$0xff]
        %v305 = vld [vmem:[%s249] sm:$0xff]
        %v306 = vld [vmem:[%s249 + $0x8] sm:$0xff]
        %v307 = vld [vmem:[%s249 + $0x10] sm:$0xff]
        %v308 = vld [vmem:[%s249 + $0x18] sm:$0xff]
        %v309 = vld [vmem:[%s249 + $0x20] sm:$0xff]
        %v310 = vld [vmem:[%s249 + $0x28] sm:$0xff]
        %v311 = vld [vmem:[%s249 + $0x30] sm:$0xff]
        %v312 = vld [vmem:[%s249 + $0x38] sm:$0xff]
        %v313 = vld [vmem:[%s249 + $0x40] sm:$0xff]
        %v314 = vld [vmem:[%s249 + $0x48] sm:$0xff]
        %v315 = vld [vmem:[%s249 + $0x50] sm:$0xff]
        %v316 = vld [vmem:[%s249 + $0x58] sm:$0xff]
        %v317 = vld [vmem:[%s249 + $0x60] sm:$0xff]
        %v318 = vld [vmem:[%s249 + $0x68] sm:$0xff]
        %v319 = vld [vmem:[%s249 + $0x70] sm:$0xff]
        %v320 = vld [vmem:[%s249 + $0x78] sm:$0xff]
        %v321 = vld [vmem:[%s249 + $0x80] sm:$0xff]
        %v322 = vld [vmem:[%s249 + $0x88] sm:$0xff]
        %v323 = vld [vmem:[%s249 + $0x90] sm:$0xff]
        %v324 = vld [vmem:[%s249 + $0x98] sm:$0xff]
        %v325 = vld [vmem:[%s249 + $0xa0] sm:$0xff]
        %v326 = vld [vmem:[%s249 + $0xa8] sm:$0xff]
        %v327 = vld [vmem:[%s249 + $0xb0] sm:$0xff]
        %v328 = vld [vmem:[%s249 + $0xb8] sm:$0xff]
        %v329 = vld [vmem:[%s249 + $0xc0] sm:$0xff]
        %v330 = vld [vmem:[%s249 + $0xc8] sm:$0xff]
        %v331 = vld [vmem:[%s249 + $0xd0] sm:$0xff]
        %v332 = vld [vmem:[%s249 + $0xd8] sm:$0xff]
        %v333 = vld [vmem:[%s249 + $0xe0] sm:$0xff]
        %v334 = vld [vmem:[%s249 + $0xe8] sm:$0xff]
        %v335 = vld [vmem:[%s249 + $0xf0] sm:$0xff]
        %v336 = vld [vmem:[%s249 + $0xf8] sm:$0xff]
        %v337 = vld [vmem:[%s249 + $0x100] sm:$0xff]
        %v338 = vld [vmem:[%s249 + $0x108] sm:$0xff]
        %v339 = vld [vmem:[%s249 + $0x110] sm:$0xff]
        %v340 = vld [vmem:[%s249 + $0x118] sm:$0xff]
        %v341 = vld [vmem:[%s249 + $0x120] sm:$0xff]
        %v342 = vld [vmem:[%s249 + $0x128] sm:$0xff]
        %v343 = vld [vmem:[%s249 + $0x130] sm:$0xff]
        %v344 = vld [vmem:[%s249 + $0x138] sm:$0xff]
        %v345 = vld [vmem:[%s249 + $0x140] sm:$0xff]
        %v346 = vld [vmem:[%s249 + $0x148] sm:$0xff]
        %v347 = vld [vmem:[%s249 + $0x150] sm:$0xff]
        %v348 = vld [vmem:[%s249 + $0x158] sm:$0xff]
        %v349 = vld [vmem:[%s249 + $0x160] sm:$0xff]
        %v350 = vld [vmem:[%s249 + $0x168] sm:$0xff]
        %v351 = vld [vmem:[%s249 + $0x170] sm:$0xff]
        %v352 = vld [vmem:[%s249 + $0x178] sm:$0xff]
        %v353 = vld [vmem:[%s249 + $0x180] sm:$0xff]
        %v354 = vld [vmem:[%s249 + $0x188] sm:$0xff]
        %v355 = vld [vmem:[%s249 + $0x190] sm:$0xff]
        %v356 = vld [vmem:[%s249 + $0x198] sm:$0xff]
        %v357 = vld [vmem:[%s249 + $0x1a0] sm:$0xff]
        %v358 = vld [vmem:[%s249 + $0x1a8] sm:$0xff]
        %v359 = vld [vmem:[%s249 + $0x1b0] sm:$0xff]
        %v360 = vld [vmem:[%s249 + $0x1b8] sm:$0xff]
        %v361 = vld [vmem:[%s249 + $0x1c0] sm:$0xff]
        %v362 = vld [vmem:[%s249 + $0x1c8] sm:$0xff]
        %v363 = vld [vmem:[%s249 + $0x1d0] sm:$0xff]
        %v364 = vld [vmem:[%s249 + $0x1d8] sm:$0xff]
        %v365 = vld [vmem:[%s249 + $0x1e0] sm:$0xff]
        %v366 = vld [vmem:[%s249 + $0x1e8] sm:$0xff]
        %v367 = vld [vmem:[%s249 + $0x1f0] sm:$0xff]
        %v368 = vld [vmem:[%s249 + $0x1f8] sm:$0xff]
        %v369 = vld [vmem:[%s249 + $0x200] sm:$0xff]
        %v370 = vld [vmem:[%s249 + $0x208] sm:$0xff]
        %v371 = vld [vmem:[%s249 + $0x210] sm:$0xff]
        %v372 = vld [vmem:[%s249 + $0x218] sm:$0xff]
        %v373 = vld [vmem:[%s249 + $0x220] sm:$0xff]
        %v374 = vld [vmem:[%s249 + $0x228] sm:$0xff]
        %v375 = vld [vmem:[%s249 + $0x230] sm:$0xff]
        %v376 = vld [vmem:[%s249 + $0x238] sm:$0xff]
        %v377 = vld [vmem:[%s249 + $0x240] sm:$0xff]
        %v378 = vld [vmem:[%s249 + $0x248] sm:$0xff]
        %v379 = vld [vmem:[%s249 + $0x250] sm:$0xff]
        %v380 = vld [vmem:[%s249 + $0x258] sm:$0xff]
        %v381 = vld [vmem:[%s249 + $0x260] sm:$0xff]
        %v382 = vld [vmem:[%s249 + $0x268] sm:$0xff]
        %v383 = vld [vmem:[%s249 + $0x270] sm:$0xff]
        %v384 = vld [vmem:[%s249 + $0x278] sm:$0xff]
        %v385 = vld [vmem:[%s249 + $0x280] sm:$0xff]
        %v386 = vld [vmem:[%s249 + $0x288] sm:$0xff]
        %v387 = vld [vmem:[%s249 + $0x290] sm:$0xff]
        %v388 = vld [vmem:[%s249 + $0x298] sm:$0xff]
        %v389 = vld [vmem:[%s249 + $0x2a0] sm:$0xff]
        %v390 = vld [vmem:[%s249 + $0x2a8] sm:$0xff]
        %v391 = vld [vmem:[%s249 + $0x2b0] sm:$0xff]
        %v392 = vld [vmem:[%s249 + $0x2b8] sm:$0xff]
        %v393 = vld [vmem:[%s249 + $0x2c0] sm:$0xff]
        %v394 = vld [vmem:[%s249 + $0x2c8] sm:$0xff]
        %v395 = vld [vmem:[%s249 + $0x2d0] sm:$0xff]
        %v396 = vld [vmem:[%s249 + $0x2d8] sm:$0xff]
        %v397 = vld [vmem:[%s249 + $0x2e0] sm:$0xff]
        %v398 = vld [vmem:[%s249 + $0x2e8] sm:$0xff]
        %v399 = vld [vmem:[%s249 + $0x2f0] sm:$0xff]
        %v400 = vld [vmem:[%s249 + $0x2f8] sm:$0xff]
        %v401 = vld [vmem:[%s249 + $0x300] sm:$0xff]
        %v402 = vld [vmem:[%s249 + $0x308] sm:$0xff]
        %v403 = vld [vmem:[%s249 + $0x310] sm:$0xff]
        %v404 = vld [vmem:[%s249 + $0x318] sm:$0xff]
        %v405 = vld [vmem:[%s249 + $0x320] sm:$0xff]
        %v406 = vld [vmem:[%s249 + $0x328] sm:$0xff]
        %v407 = vld [vmem:[%s249 + $0x330] sm:$0xff]
        %v408 = vld [vmem:[%s249 + $0x338] sm:$0xff]
        %v409 = vld [vmem:[%s249 + $0x340] sm:$0xff]
        %v410 = vld [vmem:[%s249 + $0x348] sm:$0xff]
        %v411 = vld [vmem:[%s249 + $0x350] sm:$0xff]
        %v412 = vld [vmem:[%s249 + $0x358] sm:$0xff]
        %v413 = vld [vmem:[%s249 + $0x360] sm:$0xff]
        %v414 = vld [vmem:[%s249 + $0x368] sm:$0xff]
        %v415 = vld [vmem:[%s249 + $0x370] sm:$0xff]
        %v416 = vld [vmem:[%s249 + $0x378] sm:$0xff]
        %v417 = vld [vmem:[%s249 + $0x380] sm:$0xff]
        %v418 = vld [vmem:[%s249 + $0x388] sm:$0xff]
        %v419 = vld [vmem:[%s249 + $0x390] sm:$0xff]
        %v420 = vld [vmem:[%s249 + $0x398] sm:$0xff]
        %v421 = vld [vmem:[%s249 + $0x3a0] sm:$0xff]
        %v422 = vld [vmem:[%s249 + $0x3a8] sm:$0xff]
        %v423 = vld [vmem:[%s249 + $0x3b0] sm:$0xff]
        %v424 = vld [vmem:[%s249 + $0x3b8] sm:$0xff]
        %v425 = vld [vmem:[%s249 + $0x3c0] sm:$0xff]
        %v426 = vld [vmem:[%s249 + $0x3c8] sm:$0xff]
        %v427 = vld [vmem:[%s249 + $0x3d0] sm:$0xff]
        %v428 = vld [vmem:[%s249 + $0x3d8] sm:$0xff]
        %v429 = vld [vmem:[%s249 + $0x3e0] sm:$0xff]
        %v430 = vld [vmem:[%s249 + $0x3e8] sm:$0xff]
        %v431 = vld [vmem:[%s249 + $0x3f0] sm:$0xff]
        %v432 = vld [vmem:[%s249 + $0x3f8] sm:$0xff]
        %433 = vmatpush.msra.mxu0 %v335
        %434 = vmatpush.msra.mxu0 %v333
        %435 = vmatpush.msra.mxu0 %v331
        %436 = vmatpush.msra.mxu0 %v329
        %437 = vmatpush.msra.mxu0 %v327
        %438 = vmatpush.msra.mxu0 %v325
        %439 = vmatpush.msra.mxu0 %v323
        %440 = vmatpush.msra.mxu0 %v321
        %441 = vmatpush.msra.mxu0 %v319
        %442 = vmatpush.msra.mxu0 %v317
        %443 = vmatpush.msra.mxu0 %v315
        %444 = vmatpush.msra.mxu0 %v313
        %445 = vmatpush.msra.mxu0 %v311
        %446 = vmatpush.msra.mxu0 %v309
        %447 = vmatpush.msra.mxu0 %v307
        %448 = vmatpush.msra.mxu0 %v305
        %449 = vmatmul.f32.gmra.mxu0 %v297
        %v450 = vpop.f32.mrf.mxu0
        %v451 = vadd.f32 0.0, %v450
        %452 = vmatmul.f32.gmra.mxu0 %v301
        %v453 = vpop.f32.mrf.mxu0
        %v454 = vadd.f32 0.0, %v453
        %455 = vdwg.mxu0
        %456 = vmatpush.msra.mxu0 %v367
        %457 = vmatpush.msra.mxu0 %v365
        %458 = vmatpush.msra.mxu0 %v363
        %459 = vmatpush.msra.mxu0 %v361
        %460 = vmatpush.msra.mxu0 %v359
        %461 = vmatpush.msra.mxu0 %v357
        %462 = vmatpush.msra.mxu0 %v355
        %463 = vmatpush.msra.mxu0 %v353
        %464 = vmatpush.msra.mxu0 %v351
        %465 = vmatpush.msra.mxu0 %v349
        %466 = vmatpush.msra.mxu0 %v347
        %467 = vmatpush.msra.mxu0 %v345
        %468 = vmatpush.msra.mxu0 %v343
        %469 = vmatpush.msra.mxu0 %v341
        %470 = vmatpush.msra.mxu0 %v339
        %471 = vmatpush.msra.mxu0 %v337
        %472 = vmatmul.f32.gmra.mxu0 %v298
        %v473 = vpop.f32.mrf.mxu0
        %v474 = vadd.f32 %v451, %v473
        %475 = vmatmul.f32.gmra.mxu0 %v302
        %v476 = vpop.f32.mrf.mxu0
        %v477 = vadd.f32 %v454, %v476
        %478 = vdwg.mxu0
        %479 = vmatpush.msra.mxu0 %v399
        %480 = vmatpush.msra.mxu0 %v397
        %481 = vmatpush.msra.mxu0 %v395
        %482 = vmatpush.msra.mxu0 %v393
        %483 = vmatpush.msra.mxu0 %v391
        %484 = vmatpush.msra.mxu0 %v389
        %485 = vmatpush.msra.mxu0 %v387
        %486 = vmatpush.msra.mxu0 %v385
        %487 = vmatpush.msra.mxu0 %v383
        %488 = vmatpush.msra.mxu0 %v381
        %489 = vmatpush.msra.mxu0 %v379
        %490 = vmatpush.msra.mxu0 %v377
        %491 = vmatpush.msra.mxu0 %v375
        %492 = vmatpush.msra.mxu0 %v373
        %493 = vmatpush.msra.mxu0 %v371
        %494 = vmatpush.msra.mxu0 %v369
        %495 = vmatmul.f32.gmra.mxu0 %v299
        %v496 = vpop.f32.mrf.mxu0
        %v497 = vadd.f32 %v474, %v496
        %498 = vmatmul.f32.gmra.mxu0 %v303
        %v499 = vpop.f32.mrf.mxu0
        %v500 = vadd.f32 %v477, %v499
        %501 = vdwg.mxu0
        %502 = vmatpush.msra.mxu0 %v431
        %503 = vmatpush.msra.mxu0 %v429
        %504 = vmatpush.msra.mxu0 %v427
        %505 = vmatpush.msra.mxu0 %v425
        %506 = vmatpush.msra.mxu0 %v423
        %507 = vmatpush.msra.mxu0 %v421
        %508 = vmatpush.msra.mxu0 %v419
        %509 = vmatpush.msra.mxu0 %v417
        %510 = vmatpush.msra.mxu0 %v415
        %511 = vmatpush.msra.mxu0 %v413
        %512 = vmatpush.msra.mxu0 %v411
        %513 = vmatpush.msra.mxu0 %v409
        %514 = vmatpush.msra.mxu0 %v407
        %515 = vmatpush.msra.mxu0 %v405
        %516 = vmatpush.msra.mxu0 %v403
        %517 = vmatpush.msra.mxu0 %v401
        %518 = vmatmul.f32.gmra.mxu0 %v300
        %v519 = vpop.f32.mrf.mxu0
        %v520 = vadd.f32 %v497, %v519
        %521 = vmatmul.f32.gmra.mxu0 %v304
        %v522 = vpop.f32.mrf.mxu0
        %v523 = vadd.f32 %v500, %v522
        %524 = vdwg.mxu0
        %525 = vmatpush.msra.mxu0 %v336
        %526 = vmatpush.msra.mxu0 %v334
        %527 = vmatpush.msra.mxu0 %v332
        %528 = vmatpush.msra.mxu0 %v330
        %529 = vmatpush.msra.mxu0 %v328
        %530 = vmatpush.msra.mxu0 %v326
        %531 = vmatpush.msra.mxu0 %v324
        %532 = vmatpush.msra.mxu0 %v322
        %533 = vmatpush.msra.mxu0 %v320
        %534 = vmatpush.msra.mxu0 %v318
        %535 = vmatpush.msra.mxu0 %v316
        %536 = vmatpush.msra.mxu0 %v314
        %537 = vmatpush.msra.mxu0 %v312
        %538 = vmatpush.msra.mxu0 %v310
        %539 = vmatpush.msra.mxu0 %v308
        %540 = vmatpush.msra.mxu0 %v306
        %541 = vmatmul.f32.gmra.mxu0 %v297
        %v542 = vpop.f32.mrf.mxu0
        %v543 = vadd.f32 0.0, %v542
        %544 = vmatmul.f32.gmra.mxu0 %v301
        %v545 = vpop.f32.mrf.mxu0
        %v546 = vadd.f32 0.0, %v545
        %547 = vdwg.mxu0
        %548 = vmatpush.msra.mxu0 %v368
        %549 = vmatpush.msra.mxu0 %v366
        %550 = vmatpush.msra.mxu0 %v364
        %551 = vmatpush.msra.mxu0 %v362
        %552 = vmatpush.msra.mxu0 %v360
        %553 = vmatpush.msra.mxu0 %v358
        %554 = vmatpush.msra.mxu0 %v356
        %555 = vmatpush.msra.mxu0 %v354
        %556 = vmatpush.msra.mxu0 %v352
        %557 = vmatpush.msra.mxu0 %v350
        %558 = vmatpush.msra.mxu0 %v348
        %559 = vmatpush.msra.mxu0 %v346
        %560 = vmatpush.msra.mxu0 %v344
        %561 = vmatpush.msra.mxu0 %v342
        %562 = vmatpush.msra.mxu0 %v340
        %563 = vmatpush.msra.mxu0 %v338
        %564 = vmatmul.f32.gmra.mxu0 %v298
        %v565 = vpop.f32.mrf.mxu0
        %v566 = vadd.f32 %v543, %v565
        %567 = vmatmul.f32.gmra.mxu0 %v302
        %v568 = vpop.f32.mrf.mxu0
        %v569 = vadd.f32 %v546, %v568
        %570 = vdwg.mxu0
        %571 = vmatpush.msra.mxu0 %v400
        %572 = vmatpush.msra.mxu0 %v398
        %573 = vmatpush.msra.mxu0 %v396
        %574 = vmatpush.msra.mxu0 %v394
        %575 = vmatpush.msra.mxu0 %v392
        %576 = vmatpush.msra.mxu0 %v390
        %577 = vmatpush.msra.mxu0 %v388
        %578 = vmatpush.msra.mxu0 %v386
        %579 = vmatpush.msra.mxu0 %v384
        %580 = vmatpush.msra.mxu0 %v382
        %581 = vmatpush.msra.mxu0 %v380
        %582 = vmatpush.msra.mxu0 %v378
        %583 = vmatpush.msra.mxu0 %v376
        %584 = vmatpush.msra.mxu0 %v374
        %585 = vmatpush.msra.mxu0 %v372
        %586 = vmatpush.msra.mxu0 %v370
        %587 = vmatmul.f32.gmra.mxu0 %v299
        %v588 = vpop.f32.mrf.mxu0
        %v589 = vadd.f32 %v566, %v588
        %590 = vmatmul.f32.gmra.mxu0 %v303
        %v591 = vpop.f32.mrf.mxu0
        %v592 = vadd.f32 %v569, %v591
        %593 = vdwg.mxu0
        %594 = vmatpush.msra.mxu0 %v432
        %595 = vmatpush.msra.mxu0 %v430
        %596 = vmatpush.msra.mxu0 %v428
        %597 = vmatpush.msra.mxu0 %v426
        %598 = vmatpush.msra.mxu0 %v424
        %599 = vmatpush.msra.mxu0 %v422
        %600 = vmatpush.msra.mxu0 %v420
        %601 = vmatpush.msra.mxu0 %v418
        %602 = vmatpush.msra.mxu0 %v416
        %603 = vmatpush.msra.mxu0 %v414
        %604 = vmatpush.msra.mxu0 %v412
        %605 = vmatpush.msra.mxu0 %v410
        %606 = vmatpush.msra.mxu0 %v408
        %607 = vmatpush.msra.mxu0 %v406
        %608 = vmatpush.msra.mxu0 %v404
        %609 = vmatpush.msra.mxu0 %v402
        %610 = vmatmul.f32.gmra.mxu0 %v300
        %v611 = vpop.f32.mrf.mxu0
        %v612 = vadd.f32 %v589, %v611
        %613 = vmatmul.f32.gmra.mxu0 %v304
        %v614 = vpop.f32.mrf.mxu0
        %v615 = vadd.f32 %v592, %v614
        %616 = vdwg.mxu0
        %v617 = vadd.f32 %v293, %v520
        %v618 = vadd.f32 %v294, %v612
        %v619 = vadd.f32 %v295, %v523
        %v620 = vadd.f32 %v296, %v615
        %621 = vst [vmem:[#allocation8] sm:$0xff] %v617
        %622 = vst [vmem:[#allocation8 + $0x8] sm:$0xff] %v618
        %623 = vst [vmem:[#allocation8 + $0x10] sm:$0xff] %v619
        %624 = vst [vmem:[#allocation8 + $0x18] sm:$0xff] %v620
        %p625 = scmp.eq.s32.totalorder %s28, 1
        // Predicated region
        $region49: #{tpu_custom_call.1} parent=31 // pred_check
          %p626 = pneg %p625
        $region50: #{tpu_custom_call.1} parent=31 // pred_check_branch
          %628 = sbr.rel (%p626) target = $region52
        $region51: #{tpu_custom_call.1} parent=31 // pred_region
          %v629 = vld [vmem:[#allocation8] sm:$0xff]
          %v630 = vld [vmem:[#allocation8 + $0x8] sm:$0xff]
          %v631 = vld [vmem:[#allocation8 + $0x10] sm:$0xff]
          %v632 = vld [vmem:[#allocation8 + $0x18] sm:$0xff]
          %v633 = vld [vmem:[#allocation7] sm:$0x3]
          %v635 = vperm.slane %v633, 0
          %v636 = vperm.slane %v633, 1
          %v639 = vadd.f32 %v629, %v635
          %v640 = vadd.f32 %v630, %v636
          %v641 = vadd.f32 %v631, %v635
          %v642 = vadd.f32 %v632, %v636
          %643 = vst [vmem:[#allocation8] sm:$0xff] %v639
          %644 = vst [vmem:[#allocation8 + $0x8] sm:$0xff] %v640
          %645 = vst [vmem:[#allocation8 + $0x10] sm:$0xff] %v641
          %646 = vst [vmem:[#allocation8 + $0x18] sm:$0xff] %v642
        $region52: #{tpu_custom_call.1} parent=31 // pred_fallthru
          _
        // Predicated region
        $region53: #{tpu_custom_call.1} parent=31 // pred_check
          %p647 = pneg %p142
        $region54: #{tpu_custom_call.1} parent=31 // pred_check_branch
          %649 = sbr.rel (%p647) target = $region56
        $region55: #{tpu_custom_call.1} parent=31 // pred_region
          %s650 = smul.u32 2, %s26
          %s651 = smul.u32 2, %s27
          %653 = vsyncadd [#allocation4], 0
          %s654 = smul.addr %s650, 2
          %s655 = sadd.s32 %s651, %s654
          %s656 = smul.addr %s655, 8
          %s657 = scalar_lea.hbm %s3, %s656
          %s658 = sshll.u32 [#allocation8], 4
          %s659 = int_to_ptr.vmem [resolvable:$true] %s658
          %s660 = sshll.u32 %s657, 4
          %s661 = int_to_ptr.hbm [resolvable:$true] %s660
          %666 = dma.vmem_to_hbm [thread:$0]  %s659, 512, %s661, [#allocation4], 256, 256, 16
        $region56: #{tpu_custom_call.1} parent=31 // pred_fallthru
          _
        // Predicated region
        $region57: #{tpu_custom_call.1} parent=31 // pred_check
          %p667 = pneg %p142
        $region58: #{tpu_custom_call.1} parent=31 // pred_check_branch
          %669 = sbr.rel (%p667) target = $region60
        $region59: #{tpu_custom_call.1} parent=31 // pred_region
          %671 = dma.done [#allocation4], 512
        $region60: #{tpu_custom_call.1} parent=31 // pred_fallthru
          _
      $region32: #{tpu_custom_call.1} parent=5 // pred_fallthru
        _
      %p672 = scmp.le.s32.totalorder 2, %s16
      // Predicated region
      $region61: #{tpu_custom_call.1} parent=5 // pred_check
        %p673 = pneg %p672
      $region62: #{tpu_custom_call.1} parent=5 // pred_check_branch
        %675 = sbr.rel (%p673) target = $region64
      $region63: #{tpu_custom_call.1} parent=5 // pred_region
        %s676 = ssub.s32 %s16, 2
      $region64: #{tpu_custom_call.1} parent=5 // pred_fallthru
        _
    $region6: #{tpu_custom_call.1} parent=1 // loop_footer
      %s20 = sadd.s32 1, %s16
    $region7: #{tpu_custom_call.1} parent=1 // loop_footer_branch
      %15 = sbr.rel target = $region3
    $region8: #{tpu_custom_call.1} parent=1 // loop_exit
      _
    %677 = vsyncpa [#allocation3], 1
    %s678 = scalar_lea.sflag [#allocation3], 1
    %679 = vsyncpa %s678, 1
    %680 = vsyncpa [#allocation6], 1
    %s681 = scalar_lea.sflag [#allocation6], 1
    %682 = vsyncpa %s681, 1
    %683 = vsyncpa [#allocation4], 1
    %s684 = scalar_lea.sflag [#allocation4], 1
    %685 = vsyncpa %s684, 1

</llo_original>
